<compile_context>
chip_gen: v7x
topology: tpu7x:2x2x1
jax: 0.10.0
libtpu: 0.0.40
codegen_flags: <defaults>
</compile_context>

<pallas_src>
import functools

import jax
import jax.numpy as jnp
from jax.experimental import pallas as pl
from jax.experimental.pallas import tpu as pltpu

_LANE = 128


def _round_up(x, m):
    return ((x + m - 1) // m) * m


def _largest_divisor_tile(n_pad, cap):
    """Largest multiple of 128 that divides n_pad and is <= cap (>=128)."""
    q = n_pad // _LANE
    best = 1
    for d in range(1, q + 1):
        if q % d == 0 and d * _LANE <= cap:
            best = d
    return best * _LANE


def _chip_tile_caps():
    """(tm_cap, tn_cap, vmem_limit_bytes) chosen from the chip's VMEM capacity."""
    try:
        info = pltpu.get_tpu_info()
        vmem_bytes = getattr(info, "vmem_capacity_bytes", 64 * 1024 * 1024)
    except Exception:  # pragma: no cover - conservative fallback
        vmem_bytes = 64 * 1024 * 1024
    if vmem_bytes >= 96 * 1024 * 1024:
        # v5e / v6e: 128 MiB VMEM -> big tiles, raise the scoped limit.
        return 2048, 1024, 64 * 1024 * 1024
    # v7x: 64 MiB VMEM per TensorCore -> keep TM*TN <= 1M and a 32 MiB limit.
    return 1024, 1024, 32 * 1024 * 1024


def _dist_colsum_kernel(lhs_ref, rhs_ref, out_ref, acc_ref, *, inv_n, tm):
    """Accumulates, for one column block, sum_i dist(x_i, x_j) over row blocks.

    lhs_ref: (1, TM, 8)  augmented row tile  [-2x,-2y,-2z,|x|^2,1,0,0,0]
    rhs_ref: (1, 8, TN)  augmented col tile  [x; y; z; 1; |x|^2; 0; 0; 0] (lane-dense)
    out_ref: (1, 1, TN)  mean distance per column point (written only in epilogue)
    acc_ref: (8, TN)     f32 VMEM scratch; partial row sums kept on 8 sublanes
    """
    i = pl.program_id(2)                       # row-block index (reduction axis)

    @pl.when(i == 0)
    def _():
        acc_ref[...] = jnp.zeros_like(acc_ref)

    # The augmented operands make the MXU output the squared distance directly:
    # d2[i,j] = |x_i|^2 + |x_j|^2 - 2 x_i.x_j.  Zero-padded rows give exactly 0.
    d2 = jax.lax.dot_general(
        lhs_ref[0], rhs_ref[0], (((1,), (0,)), ((), ())),
        preferred_element_type=jnp.float32)
    dist = jnp.sqrt(jnp.maximum(d2, 0.0))      # sqrt runs on the EUP slot (free-ish)

    # Reduce rows only down to 8 partial sublanes -> pure vadds in the hot loop.
    acc_ref[...] += jnp.sum(dist.reshape(tm // 8, 8, dist.shape[1]), axis=0)

    @pl.when(i == pl.num_programs(2) - 1)
    def _():
        colsum = jnp.sum(acc_ref[...], axis=0, keepdims=True)        # (1, TN) XLU, once
        out_ref[...] = (colsum * inv_n).reshape(1, 1, -1)


def compute_mean_dist(xyz):
    """Returns (B, N) mean pairwise distance per point (== cdist(x,x).mean(1))."""
    B, N, _ = xyz.shape
    xyz_f = xyz.astype(jnp.float32)

    # Precompute squared norms once; build augmented operands so the MXU does all
    # the d2 arithmetic (feedback: fold -2 and the sq-norm adds out of the VPU path).
    sq = jnp.sum(xyz_f * xyz_f, axis=-1, keepdims=True)              # (B, N, 1)
    ones = jnp.ones_like(sq)
    zeros3 = jnp.zeros((B, N, 3), jnp.float32)
    lhs = jnp.concatenate([-2.0 * xyz_f, sq, ones, zeros3], axis=-1)  # (B, N, 8)
    rhs = jnp.concatenate([xyz_f, ones, sq, zeros3], axis=-1)         # (B, N, 8)

    n_pad = _round_up(N, _LANE)                                       # lane-dense slab
    tm_cap, tn_cap, vmem_limit = _chip_tile_caps()
    tm = _largest_divisor_tile(n_pad, tm_cap)
    tn = _largest_divisor_tile(n_pad, tn_cap)
    # v7x has 2 TensorCores: keep >= 2 parallel column blocks when B == 1.
    if B == 1 and n_pad // tn < 2 and n_pad >= 2 * _LANE:
        tn = _largest_divisor_tile(n_pad, n_pad // 2)

    if n_pad != N:
        # Zero-padded augmented rows contribute exactly zero distance, so no
        # in-kernel masking is needed; padded output columns are sliced off below.
        pad = ((0, 0), (0, n_pad - N), (0, 0))
        lhs = jnp.pad(lhs, pad)
        rhs = jnp.pad(rhs, pad)
    rhs_t = jnp.transpose(rhs, (0, 2, 1))                             # (B, 8, Np)

    grid = (B, n_pad // tn, n_pad // tm)                              # reduction (rows) last
    kernel = functools.partial(_dist_colsum_kernel, inv_n=1.0 / N, tm=tm)

    out = pl.pallas_call(
        kernel,
        out_shape=jax.ShapeDtypeStruct((B, 1, n_pad), jnp.float32),
        grid=grid,
        in_specs=[
            pl.BlockSpec((1, tm, 8), lambda b, j, i: (b, i, 0)),      # row tile
            pl.BlockSpec((1, 8, tn), lambda b, j, i: (b, 0, j)),      # column tile
        ],
        out_specs=pl.BlockSpec((1, 1, tn), lambda b, j, i: (b, 0, j)),
        scratch_shapes=[pltpu.VMEM((8, tn), jnp.float32)],
        compiler_params=pltpu.CompilerParams(
            dimension_semantics=("parallel", "parallel", "arbitrary"),
            vmem_limit_bytes=vmem_limit),
    )(lhs, rhs_t)

    return out[:, 0, :N]                                              # (B, N)


def compute_sampling_prob(xyz):
    mean_d = compute_mean_dist(xyz)                      # Pallas hot path
    # Stabilized: exp(-(m - min m)) has the identical normalized prob as exp(-m)
    # and never underflows to an all-zero / NaN distribution.
    mean_d = mean_d - jnp.min(mean_d, axis=1, keepdims=True)
    dens = jnp.exp(-mean_d)
    return dens / jnp.sum(dens, axis=1, keepdims=True)   # (B, N)


def _sample_one(key, p, n, sample_num):
    keys = jax.random.split(key, 4)
    draws = [
        jax.random.choice(keys[r], n, shape=(sample_num,), replace=False, p=p)
        for r in range(3)
    ]
    combined = jnp.concatenate(draws).astype(jnp.int32)
    # TODO(synk): torch.multinomial/unique/randperm RNG streams differ from
    # jax.random; semantics match (unique is sorted, as in torch.unique).
    uniq = jnp.unique(combined, size=3 * sample_num, fill_value=n)
    n_unique = jnp.sum(uniq < n)
    perm = jax.random.permutation(keys[3], n)[:sample_num].astype(jnp.int32)
    return jnp.where(n_unique > sample_num, uniq[:sample_num].astype(jnp.int32), perm)


def random_sampling(xyz, features=None, ratio=0.5, key=None):
    """Mirrors RandomSampling.forward.  Returns (new_xyz, new_features, sample_idx)."""
    if key is None:
        key = jax.random.PRNGKey(0)
    B, N, _ = xyz.shape
    sample_num = max(1, int(N * ratio))

    prob = compute_sampling_prob(xyz)                    # (B, N)

    keys = jax.random.split(key, B)
    sample_idx = jax.vmap(
        lambda k, p: _sample_one(k, p, N, sample_num))(keys, prob)      # (B, S)

    new_xyz = jnp.take_along_axis(xyz, sample_idx[..., None], axis=1)
    new_features = (jnp.take_along_axis(features, sample_idx[..., None], axis=1)
                    if features is not None else None)
    return new_xyz, new_features, sample_idx


if __name__ == "__main__":
    key = jax.random.PRNGKey(0)
    kx, kf, ks = jax.random.split(key, 3)
    B, N, C = 2, 16, 8
    xyz = jax.random.normal(kx, (B, N, 3), dtype=jnp.float32)
    features = jax.random.normal(kf, (B, N, C), dtype=jnp.float32)

    # Cross-check the Pallas mean-distance against a pure-JAX reference.
    mean_d = compute_mean_dist(xyz)
    diff = xyz[:, :, None, :] - xyz[:, None, :, :]
    ref = jnp.sqrt(jnp.sum(diff * diff, axis=-1)).mean(axis=2)
    assert bool(jnp.allclose(mean_d, ref, atol=1e-3, rtol=1e-3))

    new_xyz, new_features, sample_idx = random_sampling(
        xyz, features, ratio=0.5, key=ks)
    jax.block_until_ready((new_xyz, new_features, sample_idx))

    S = max(1, int(N * 0.5))
    assert new_xyz.shape == (B, S, 3)
    assert new_features.shape == (B, S, C)
    assert sample_idx.shape == (B, S)
    assert bool(jnp.all((sample_idx >= 0) & (sample_idx < N)))
    assert bool(jnp.all(jnp.isfinite(new_xyz)))
    print("KERNEL_OK")
</pallas_src>

<mosaic_0001>
module attributes {stable_mosaic.version = 11 : i64} {
  func.func @_dist_colsum_kernel(%arg0: i32, %arg1: i32, %arg2: i32, %arg3: memref<1x128x8xf32, #tpu.memory_space<vmem>>, %arg4: memref<1x8x128xf32, #tpu.memory_space<vmem>>, %arg5: memref<1x1x128xf32, #tpu.memory_space<vmem>>, %arg6: memref<8x128xf32, #tpu.memory_space<vmem>>) attributes {dimension_semantics = [#tpu.dimension_semantics<parallel>, #tpu.dimension_semantics<parallel>, #tpu.dimension_semantics<arbitrary>], iteration_bounds = array<i64: 2, 1, 1>, scalar_prefetch = 0 : i64, scratch_operands = 1 : i64, tpu.core_type = #tpu.core_type<tc>, window_params = [{transform_indices = @transform_0, window_bounds = array<i64: 1, 128, 8>}, {transform_indices = @transform_1, window_bounds = array<i64: 1, 8, 128>}, {transform_indices = @transform_2, window_bounds = array<i64: 1, 1, 128>}]} {
    %c0_i32 = arith.constant 0 : i32
    %0 = arith.cmpi eq, %arg2, %c0_i32 : i32
    %1 = arith.extui %0 : i1 to i32
    %c0_i32_0 = arith.constant 0 : i32
    %2 = arith.cmpi ne, %1, %c0_i32_0 : i32
    scf.if %2 {
      %cst_14 = arith.constant 0.000000e+00 : f32
      %19 = vector.broadcast %cst_14 : f32 to vector<8x128xf32>
      %c0_15 = arith.constant 0 : index
      %c0_16 = arith.constant 0 : index
      %20 = vector.load %arg6[%c0_15, %c0_16] : memref<8x128xf32, #tpu.memory_space<vmem>>, vector<8x128xf32>
      tpu.vector_store %arg6[%c0_15, %c0_16], %19 {strides = array<i32>} : memref<8x128xf32, #tpu.memory_space<vmem>>, vector<8x128xf32>,
    } else {
    }
    %c0 = arith.constant 0 : index
    %c0_1 = arith.constant 0 : index
    %c0_2 = arith.constant 0 : index
    %3 = vector.load %arg3[%c0, %c0_1, %c0_2] : memref<1x128x8xf32, #tpu.memory_space<vmem>>, vector<1x128x8xf32>
    %4 = vector.shape_cast %3 : vector<1x128x8xf32> to vector<128x8xf32>
    %c0_3 = arith.constant 0 : index
    %c0_4 = arith.constant 0 : index
    %c0_5 = arith.constant 0 : index
    %5 = vector.load %arg4[%c0_3, %c0_4, %c0_5] : memref<1x8x128xf32, #tpu.memory_space<vmem>>, vector<1x8x128xf32>
    %6 = vector.shape_cast %5 : vector<1x8x128xf32> to vector<8x128xf32>
    %cst = arith.constant dense<0.000000e+00> : vector<128x128xf32>
    %7 = tpu.matmul %4, %6, %cst {dimension_numbers = #tpu.dot_dimension_numbers<[1], [0], [0], [1], [0, 0, 1, 1], [], []>} : vector<128x8xf32>, vector<8x128xf32>, vector<128x128xf32> -> vector<128x128xf32>
    %cst_6 = arith.constant 0.000000e+00 : f32
    %8 = vector.broadcast %cst_6 : f32 to vector<128x128xf32>
    %9 = arith.maximumf %7, %8 : vector<128x128xf32>
    %10 = math.sqrt %9 : vector<128x128xf32>
    %c0_7 = arith.constant 0 : index
    %c0_8 = arith.constant 0 : index
    %11 = vector.load %arg6[%c0_7, %c0_8] : memref<8x128xf32, #tpu.memory_space<vmem>>, vector<8x128xf32>
    %12 = vector.shape_cast %10 : vector<128x128xf32> to vector<16x8x128xf32>
    %cst_9 = arith.constant dense<0.000000e+00> : vector<8x128xf32>
    %13 = vector.multi_reduction <add>, %12, %cst_9 [0] : vector<16x8x128xf32> to vector<8x128xf32>
    %14 = arith.addf %11, %13 : vector<8x128xf32>
    %c0_10 = arith.constant 0 : index
    %c0_11 = arith.constant 0 : index
    %15 = vector.load %arg6[%c0_10, %c0_11] : memref<8x128xf32, #tpu.memory_space<vmem>>, vector<8x128xf32>
    tpu.vector_store %arg6[%c0_10, %c0_11], %14 {strides = array<i32>} : memref<8x128xf32, #tpu.memory_space<vmem>>, vector<8x128xf32>,
    %c0_i32_12 = arith.constant 0 : i32
    %16 = arith.cmpi eq, %arg2, %c0_i32_12 : i32
    %17 = arith.extui %16 : i1 to i32
    %c0_i32_13 = arith.constant 0 : i32
    %18 = arith.cmpi ne, %17, %c0_i32_13 : i32
    scf.if %18 {
      %c0_14 = arith.constant 0 : index
      %c0_15 = arith.constant 0 : index
      %19 = vector.load %arg6[%c0_14, %c0_15] : memref<8x128xf32, #tpu.memory_space<vmem>>, vector<8x128xf32>
      %cst_16 = arith.constant dense<0.000000e+00> : vector<128xf32>
      %20 = vector.multi_reduction <add>, %19, %cst_16 [0] : vector<8x128xf32> to vector<128xf32>
      %21 = vector.shape_cast %20 : vector<128xf32> to vector<1x128xf32>
      %cst_17 = arith.constant 6.250000e-02 : f32
      %22 = vector.broadcast %cst_17 : f32 to vector<1x128xf32>
      %23 = arith.mulf %21, %22 : vector<1x128xf32>
      %24 = vector.shape_cast %23 : vector<1x128xf32> to vector<1x1x128xf32>
      %c0_18 = arith.constant 0 : index
      %c0_19 = arith.constant 0 : index
      %c0_20 = arith.constant 0 : index
      %25 = vector.load %arg5[%c0_18, %c0_19, %c0_20] : memref<1x1x128xf32, #tpu.memory_space<vmem>>, vector<1x1x128xf32>
      tpu.vector_store %arg5[%c0_18, %c0_19, %c0_20], %24 {strides = array<i32>} : memref<1x1x128xf32, #tpu.memory_space<vmem>>, vector<1x1x128xf32>,
    } else {
    }
    return
  }
  func.func @transform_0(%arg0: i32, %arg1: i32, %arg2: i32) -> (i32, i32, i32) {
    %c0_i32 = arith.constant 0 : i32
    %c0_i32_0 = arith.constant 0 : i32
    return %arg0, %arg2, %c0_i32 : i32, i32, i32
  }
  func.func @transform_1(%arg0: i32, %arg1: i32, %arg2: i32) -> (i32, i32, i32) {
    %c0_i32 = arith.constant 0 : i32
    %c0_i32_0 = arith.constant 0 : i32
    return %arg0, %c0_i32, %arg1 : i32, i32, i32
  }
  func.func @transform_2(%arg0: i32, %arg1: i32, %arg2: i32) -> (i32, i32, i32) {
    %c0_i32 = arith.constant 0 : i32
    %c0_i32_0 = arith.constant 0 : i32
    return %arg0, %c0_i32, %arg1 : i32, i32, i32
  }
}

</mosaic_0001>

<llo_original>
// kernel: tpu_custom_call.1
$region0: #{tpu_custom_call.1}
  #allocation0 [shape = 'u32[]', space=smem, size = 0x4, offset = 0x4, fixed_abs, tag = 'smem constant byte address 0x4 - core index']
  #allocation1 [shape = 'u32[144,128]{1,0:T(1,128)}', space=vmem, size = 0x12000, scoped, tag = 'internal scratch']
  #allocation2 [shape = 'f32[8,128]{1,0:T(8,128)}', space=vmem, size = 0x1000, scoped, tag = 'scratch operand']
  %s0 = inlined_call_operand.vmem [shape: f32[2,128,8], index: 0, kind: input, shape index: {}]
  %s1 = inlined_call_operand.vmem [shape: f32[2,8,128], index: 1, kind: input, shape index: {}]
  %s2 = inlined_call_operand.hbm [shape: f32[2,1,128], index: 2, kind: output, shape index: {}]
  %s3 = sld [smem:[#allocation0]]
  $region49: #{tpu_custom_call.1} parent=0
    _
  %s5 = ssub.s32 1, %s3
  %s6 = scalar_select 0, %s5, %s3
  $region1: #{tpu_custom_call.1} parent=0
    #allocation3 [shape = 'u8[1024]{0}', space=vmem, size = 0x400, scoped, tag = 'output window, operand 0']
    #allocation4 [shape = 's32[2]{0}', space=sflag, size = 0x8, scoped, tag = 'scoped memory for tpu_custom_call.1']
    %7 = vsyncpa [#allocation4], 0
    %s8 = scalar_lea.sflag [#allocation4], 1
    %9 = vsyncpa %s8, 0
    loop: start=0, step=1, limit=4
    $region2: #{tpu_custom_call.1} parent=1 // loop_pre_header
      _
    $region3: #{tpu_custom_call.1} parent=1 // loop_header
      %s11 = sphi 0, %s15
      %p12 = scmp.ge.s32.totalorder %s11, 4
      %s18 = sphi 0, %s37
      %s19 = sphi 0, %s33
      %s20 = sphi 0, %s29
      %s21 = sphi 0, %s18
      %s22 = sphi 0, %s19
      %s23 = sphi 0, %s20
      %s24 = sphi 0, %s21
      %s25 = sphi 0, %s22
      %s26 = sphi 0, %s23
      %s42 = sphi 0, %s44
      %s45 = sphi 0, %s42
      %s46 = sphi 0, %s45
      %s62 = sphi 0, %s46
      %s70 = sphi 0, %s72
      %s73 = sphi 0, %s70
      %s74 = sphi 0, %s73
      %s90 = sphi 0, %s74
      %s98 = sphi 0, %s100
      %s101 = sphi 0, %s98
      %s102 = sphi 0, %s101
      %s118 = sphi 0, %s102
    $region4: #{tpu_custom_call.1} parent=1 // loop_header_branch
      %14 = sbr.rel (%p12) target = $region8
    $region5: #{tpu_custom_call.1} parent=1 // loop_body
      %s16 = ssub.s32 %s11, 1
      %s17 = ssub.s32 %s11, 2
      %s27 = sadd.s32 1, %s20
      %p28 = scmp.ge.s32.totalorder %s27, 1
      %s29 = scalar_select %p28, 0, %s27
      %s30 = sadd.s32 1, %s19
      %s31 = scalar_select %p28, %s30, %s19
      %p32 = scmp.ge.s32.totalorder %s31, 1
      %s33 = scalar_select %p32, 0, %s31
      %s34 = sadd.s32 1, %s18
      %s35 = scalar_select %p32, %s34, %s18
      %p36 = scmp.ge.s32.totalorder %s35, 2
      %s37 = scalar_select %p36, 0, %s35
      %s38 = ssub.s32 %s18, %s37
      %s39 = ssub.s32 %s20, %s29
      %s40 = sor.u32 %s38, %s39
      %p41 = scmp.eq.s32.totalorder %s40, 0
      %s43 = sadd.s32 %s42, 1
      %s44 = scalar_select %p41, %s42, %s43
      %p47 = pneg %p41
      %p48 = scmp.eq.s32.totalorder %s11, 1
      %p49 = por %p47, %p48
      %p50 = scmp.ne.s32.totalorder %s42, %s45
      %p51 = scmp.eq.s32.totalorder %s11, 0
      %p52 = por %p50, %p51
      %p53 = scmp.ne.s32.totalorder %s42, %s45
      %p54 = scmp.eq.s32.totalorder %s16, 1
      %p55 = por %p53, %p54
      %p56 = scmp.ne.s32.totalorder %s45, %s46
      %p57 = scmp.eq.s32.totalorder %s16, 0
      %p58 = por %p56, %p57
      %p59 = scmp.ne.s32.totalorder %s45, %s46
      %p60 = scmp.eq.s32.totalorder %s17, 1
      %p61 = por %p59, %p60
      %p63 = scmp.ne.s32.totalorder %s46, %s62
      %p64 = scmp.eq.s32.totalorder %s17, 0
      %p65 = por %p63, %p64
      %s66 = ssub.s32 %s18, %s37
      %s67 = ssub.s32 %s19, %s33
      %s68 = sor.u32 %s66, %s67
      %p69 = scmp.eq.s32.totalorder %s68, 0
      %s71 = sadd.s32 %s70, 1
      %s72 = scalar_select %p69, %s70, %s71
      %p75 = pneg %p69
      %p76 = scmp.eq.s32.totalorder %s11, 1
      %p77 = por %p75, %p76
      %p78 = scmp.ne.s32.totalorder %s70, %s73
      %p79 = scmp.eq.s32.totalorder %s11, 0
      %p80 = por %p78, %p79
      %p81 = scmp.ne.s32.totalorder %s70, %s73
      %p82 = scmp.eq.s32.totalorder %s16, 1
      %p83 = por %p81, %p82
      %p84 = scmp.ne.s32.totalorder %s73, %s74
      %p85 = scmp.eq.s32.totalorder %s16, 0
      %p86 = por %p84, %p85
      %p87 = scmp.ne.s32.totalorder %s73, %s74
      %p88 = scmp.eq.s32.totalorder %s17, 1
      %p89 = por %p87, %p88
      %p91 = scmp.ne.s32.totalorder %s74, %s90
      %p92 = scmp.eq.s32.totalorder %s17, 0
      %p93 = por %p91, %p92
      %s94 = ssub.s32 %s18, %s37
      %s95 = ssub.s32 %s19, %s33
      %s96 = sor.u32 %s94, %s95
      %p97 = scmp.eq.s32.totalorder %s96, 0
      %s99 = sadd.s32 %s98, 1
      %s100 = scalar_select %p97, %s98, %s99
      %p103 = pneg %p97
      %p104 = scmp.eq.s32.totalorder %s11, 1
      %p105 = por %p103, %p104
      %p106 = scmp.ne.s32.totalorder %s98, %s101
      %p107 = scmp.eq.s32.totalorder %s11, 0
      %p108 = por %p106, %p107
      %p109 = scmp.ne.s32.totalorder %s98, %s101
      %p110 = scmp.eq.s32.totalorder %s16, 1
      %p111 = por %p109, %p110
      %p112 = scmp.ne.s32.totalorder %s101, %s102
      %p113 = scmp.eq.s32.totalorder %s16, 0
      %p114 = por %p112, %p113
      %p115 = scmp.ne.s32.totalorder %s101, %s102
      %p116 = scmp.eq.s32.totalorder %s17, 1
      %p117 = por %p115, %p116
      %p119 = scmp.ne.s32.totalorder %s102, %s118
      %p120 = scmp.eq.s32.totalorder %s17, 0
      %p121 = por %p119, %p120
      %p122 = scmp.le.s32.totalorder 1, %s11
      %p123 = scmp.lt.s32.totalorder %s11, 3
      %p124 = pnand %p122, %p123
      %p125 = pneg %p124
      // Predicated region
      $region9: #{tpu_custom_call.1} parent=5 // pred_check
        _
      $region10: #{tpu_custom_call.1} parent=5 // pred_check_branch
        %127 = sbr.rel (%p124) target = $region12
      $region11: #{tpu_custom_call.1} parent=5 // pred_region
        %s128 = ssub.s32 %s11, 1
      $region12: #{tpu_custom_call.1} parent=5 // pred_fallthru
        _
      %p129 = scmp.lt.s32.totalorder %s11, 2
      // Predicated region
      $region13: #{tpu_custom_call.1} parent=5 // pred_check
        %p130 = pneg %p129
      $region14: #{tpu_custom_call.1} parent=5 // pred_check_branch
        %132 = sbr.rel (%p130) target = $region16
      $region15: #{tpu_custom_call.1} parent=5 // pred_region
        // Predicated region
        $region17: #{tpu_custom_call.1} parent=15 // pred_check
          %p133 = pneg %p52
        $region18: #{tpu_custom_call.1} parent=15 // pred_check_branch
          %135 = sbr.rel (%p133) target = $region20
        $region19: #{tpu_custom_call.1} parent=15 // pred_region
          %s136 = smul.u32 16, %s20
          %p137 = scmp.lt.s32.totalorder %s18, 1
          %s138 = scalar_select %p137, %s18, 1
          %p139 = scmp.lt.s32.totalorder %s136, 15
          %s140 = scalar_select %p139, %s136, 15
          %s141 = smul.addr %s138, 16
          %s142 = sadd.s32 %s140, %s141
          %s143 = smul.addr %s142, 8
          %s144 = scalar_lea.vmem %s0, %s143
          %s145 = smul.u32 16, %s20
        $region20: #{tpu_custom_call.1} parent=15 // pred_fallthru
          _
        // Predicated region
        $region21: #{tpu_custom_call.1} parent=15 // pred_check
          %p146 = pneg %p80
        $region22: #{tpu_custom_call.1} parent=15 // pred_check_branch
          %148 = sbr.rel (%p146) target = $region24
        $region23: #{tpu_custom_call.1} parent=15 // pred_region
          %p149 = scmp.lt.s32.totalorder %s18, 1
          %s150 = scalar_select %p149, %s18, 1
          %p151 = scmp.lt.s32.totalorder %s19, 0
          %s152 = scalar_select %p151, %s19, 0
          %s153 = sadd.s32 %s152, %s150
          %s154 = smul.addr %s153, 8
          %s155 = scalar_lea.vmem %s1, %s154
        $region24: #{tpu_custom_call.1} parent=15 // pred_fallthru
          _
      $region16: #{tpu_custom_call.1} parent=5 // pred_fallthru
        _
      %p156 = scmp.le.s32.totalorder 1, %s11
      %p157 = scmp.lt.s32.totalorder %s11, 3
      %p158 = pnand %p156, %p157
      %p159 = pneg %p158
      // Predicated region
      $region25: #{tpu_custom_call.1} parent=5 // pred_check
        _
      $region26: #{tpu_custom_call.1} parent=5 // pred_check_branch
        %161 = sbr.rel (%p158) target = $region28
      $region27: #{tpu_custom_call.1} parent=5 // pred_region
        %s162 = ssub.s32 %s11, 1
        %s163 = smul.u32 16, %s23
        %p164 = scmp.lt.s32.totalorder %s21, 1
        %s165 = scalar_select %p164, %s21, 1
        %p166 = scmp.lt.s32.totalorder %s163, 15
        %s167 = scalar_select %p166, %s163, 15
        %s168 = smul.addr %s165, 16
        %s169 = sadd.s32 %s167, %s168
        %s170 = smul.addr %s169, 8
        %s171 = scalar_lea.vmem %s0, %s170
        %p172 = pneg %p58
        %p173 = pneg %p55
        %p174 = scmp.lt.s32.totalorder %s21, 1
        %s175 = scalar_select %p174, %s21, 1
        %p176 = scmp.lt.s32.totalorder %s22, 0
        %s177 = scalar_select %p176, %s22, 0
        %s178 = sadd.s32 %s177, %s175
        %s179 = smul.addr %s178, 8
        %s180 = scalar_lea.vmem %s1, %s179
        %p181 = pneg %p86
        %p182 = pneg %p83
        %p183 = pneg %p114
        %p184 = pneg %p111
        %s185 = sand.u32 %s101, 1
        %s186 = scalar_lea.sflag [#allocation4], %s185
        %s187 = sand.u32 %s101, 1
        %s188 = scalar_lea.vmem [#allocation3], %s187
        %s189 = smul.u32 16, %s23
        %p190 = scmp.lt.s32.totalorder %s21, 1
        %s191 = scalar_select %p190, %s21, 1
        %p192 = scmp.lt.s32.totalorder %s189, 15
        %s193 = scalar_select %p192, %s189, 15
        %s194 = smul.addr %s191, 16
        %s195 = sadd.s32 %s193, %s194
        %s196 = smul.addr %s195, 8
        %s197 = scalar_lea.vmem %s0, %s196
        %s198 = smul.u32 16, %s23
        %p199 = scmp.lt.s32.totalorder %s21, 1
        %s200 = scalar_select %p199, %s21, 1
        %p201 = scmp.lt.s32.totalorder %s22, 0
        %s202 = scalar_select %p201, %s22, 0
        %s203 = sadd.s32 %s202, %s200
        %s204 = smul.addr %s203, 8
        %s205 = scalar_lea.vmem %s1, %s204
        %p206 = scmp.eq.s32.totalorder %s23, 0
        // Predicated region
        $region29: #{tpu_custom_call.1} parent=27 // pred_check
          %p207 = pneg %p206
        $region30: #{tpu_custom_call.1} parent=27 // pred_check_branch
          %209 = sbr.rel (%p207) target = $region32
        $region31: #{tpu_custom_call.1} parent=27 // pred_region
          %210 = vst [vmem:[#allocation2] sm:$0xff] 0.0
        $region32: #{tpu_custom_call.1} parent=27 // pred_fallthru
          _
        %v211 = vld [vmem:[%s197] sm:$0xff]
        %v212 = vld [vmem:[%s197 + $0x8] sm:$0xff]
        %v213 = vld [vmem:[%s197 + $0x10] sm:$0xff]
        %v214 = vld [vmem:[%s197 + $0x18] sm:$0xff]
        %v215 = vld [vmem:[%s197 + $0x20] sm:$0xff]
        %v216 = vld [vmem:[%s197 + $0x28] sm:$0xff]
        %v217 = vld [vmem:[%s197 + $0x30] sm:$0xff]
        %v218 = vld [vmem:[%s197 + $0x38] sm:$0xff]
        %v219 = vld [vmem:[%s197 + $0x40] sm:$0xff]
        %v220 = vld [vmem:[%s197 + $0x48] sm:$0xff]
        %v221 = vld [vmem:[%s197 + $0x50] sm:$0xff]
        %v222 = vld [vmem:[%s197 + $0x58] sm:$0xff]
        %v223 = vld [vmem:[%s197 + $0x60] sm:$0xff]
        %v224 = vld [vmem:[%s197 + $0x68] sm:$0xff]
        %v225 = vld [vmem:[%s197 + $0x70] sm:$0xff]
        %v226 = vld [vmem:[%s197 + $0x78] sm:$0xff]
        %v227 = vld [vmem:[%s205] sm:$0xff]
        %vm228 = vcmask 64512
        %v230 = vsel %vm228, %v211, 0
        %v233 = vsel %vm228, %v212, 0
        %v236 = vsel %vm228, %v213, 0
        %v239 = vsel %vm228, %v214, 0
        %v242 = vsel %vm228, %v215, 0
        %v245 = vsel %vm228, %v216, 0
        %v248 = vsel %vm228, %v217, 0
        %v251 = vsel %vm228, %v218, 0
        %v254 = vsel %vm228, %v219, 0
        %v257 = vsel %vm228, %v220, 0
        %v260 = vsel %vm228, %v221, 0
        %v263 = vsel %vm228, %v222, 0
        %v266 = vsel %vm228, %v223, 0
        %v269 = vsel %vm228, %v224, 0
        %v272 = vsel %vm228, %v225, 0
        %v275 = vsel %vm228, %v226, 0
        %277 = vmatprep.subr.mxu0 0.0
        %278 = vmatpush1.msra.mxu0 %v227
        %279 = vmatprep.subr.mxu0 0.0
        %280 = vmatpush1.msra.mxu0 0.0
        %281 = vmatprep.subr.mxu0 0.0
        %282 = vmatpush1.msra.mxu0 0.0
        %283 = vmatprep.subr.mxu0 0.0
        %284 = vmatpush1.msra.mxu0 0.0
        %285 = vmatprep.subr.mxu0 0.0
        %286 = vmatpush1.msra.mxu0 0.0
        %287 = vmatprep.subr.mxu0 0.0
        %288 = vmatpush1.msra.mxu0 0.0
        %289 = vmatprep.subr.mxu0 0.0
        %290 = vmatpush1.msra.mxu0 0.0
        %291 = vmatprep.subr.mxu0 0.0
        %292 = vmatpush1.msra.mxu0 0.0
        %293 = vmatprep.subr.mxu0 0.0
        %294 = vmatpush1.msra.mxu0 0.0
        %295 = vmatprep.subr.mxu0 0.0
        %296 = vmatpush1.msra.mxu0 0.0
        %297 = vmatprep.subr.mxu0 0.0
        %298 = vmatpush1.msra.mxu0 0.0
        %299 = vmatprep.subr.mxu0 0.0
        %300 = vmatpush1.msra.mxu0 0.0
        %301 = vmatprep.subr.mxu0 0.0
        %302 = vmatpush1.msra.mxu0 0.0
        %303 = vmatprep.subr.mxu0 0.0
        %304 = vmatpush1.msra.mxu0 0.0
        %305 = vmatprep.subr.mxu0 0.0
        %306 = vmatpush1.msra.mxu0 0.0
        %307 = vmatprep.subr.mxu0 0.0
        %308 = vmatpush1.msra.mxu0 0.0
        %309 = vmatprep.subr.mxu0 0.0
        %310 = vmatpush1.msra.mxu0 0.0
        %311 = vmatprep.subr.mxu0 0.0
        %312 = vmatpush1.msra.mxu0 0.0
        %313 = vmatprep.subr.mxu0 0.0
        %314 = vmatpush1.msra.mxu0 0.0
        %315 = vmatprep.subr.mxu0 0.0
        %316 = vmatpush1.msra.mxu0 0.0
        %317 = vmatprep.subr.mxu0 0.0
        %318 = vmatpush1.msra.mxu0 0.0
        %319 = vmatprep.subr.mxu0 0.0
        %320 = vmatpush1.msra.mxu0 0.0
        %321 = vmatprep.subr.mxu0 0.0
        %322 = vmatpush1.msra.mxu0 0.0
        %323 = vmatprep.subr.mxu0 0.0
        %324 = vmatpush1.msra.mxu0 0.0
        %325 = vmatprep.subr.mxu0 0.0
        %326 = vmatpush1.msra.mxu0 0.0
        %327 = vmatprep.subr.mxu0 0.0
        %328 = vmatpush1.msra.mxu0 0.0
        %329 = vmatprep.subr.mxu0 0.0
        %330 = vmatpush1.msra.mxu0 0.0
        %331 = vmatprep.subr.mxu0 0.0
        %332 = vmatpush1.msra.mxu0 0.0
        %333 = vmatprep.subr.mxu0 0.0
        %334 = vmatpush1.msra.mxu0 0.0
        %335 = vmatprep.subr.mxu0 0.0
        %336 = vmatpush1.msra.mxu0 0.0
        %337 = vmatprep.subr.mxu0 0.0
        %338 = vmatpush1.msra.mxu0 0.0
        %339 = vmatprep.subr.mxu0 0.0
        %340 = vmatpush1.msra.mxu0 0.0
        %341 = vmatprep.mubr.f32.mxu0 0.0
        %342 = vmatmul.mubr.f32.gmra.mrb[0].mxu0 %v230
        %v343 = vpop.f32.mrb[0].mxu0
        %v344 = vadd.f32 0.0, %v343
        %v345 = vpop.f32.mrb[0].mxu0
        %346 = vmatprep.mubr.f32.mxu0 0.0
        %347 = vmatmul.mubr.f32.gmra.mrb[0].mxu0 %v233
        %v348 = vpop.f32.mrb[0].mxu0
        %v349 = vadd.f32 0.0, %v348
        %v350 = vpop.f32.mrb[0].mxu0
        %351 = vmatprep.mubr.f32.mxu0 0.0
        %352 = vmatmul.mubr.f32.gmra.mrb[0].mxu0 %v236
        %v353 = vpop.f32.mrb[0].mxu0
        %v354 = vadd.f32 0.0, %v353
        %v355 = vpop.f32.mrb[0].mxu0
        %356 = vmatprep.mubr.f32.mxu0 0.0
        %357 = vmatmul.mubr.f32.gmra.mrb[0].mxu0 %v239
        %v358 = vpop.f32.mrb[0].mxu0
        %v359 = vadd.f32 0.0, %v358
        %v360 = vpop.f32.mrb[0].mxu0
        %361 = vmatprep.mubr.f32.mxu0 0.0
        %362 = vmatmul.mubr.f32.gmra.mrb[0].mxu0 %v242
        %v363 = vpop.f32.mrb[0].mxu0
        %v364 = vadd.f32 0.0, %v363
        %v365 = vpop.f32.mrb[0].mxu0
        %366 = vmatprep.mubr.f32.mxu0 0.0
        %367 = vmatmul.mubr.f32.gmra.mrb[0].mxu0 %v245
        %v368 = vpop.f32.mrb[0].mxu0
        %v369 = vadd.f32 0.0, %v368
        %v370 = vpop.f32.mrb[0].mxu0
        %371 = vmatprep.mubr.f32.mxu0 0.0
        %372 = vmatmul.mubr.f32.gmra.mrb[0].mxu0 %v248
        %v373 = vpop.f32.mrb[0].mxu0
        %v374 = vadd.f32 0.0, %v373
        %v375 = vpop.f32.mrb[0].mxu0
        %376 = vmatprep.mubr.f32.mxu0 0.0
        %377 = vmatmul.mubr.f32.gmra.mrb[0].mxu0 %v251
        %v378 = vpop.f32.mrb[0].mxu0
        %v379 = vadd.f32 0.0, %v378
        %v380 = vpop.f32.mrb[0].mxu0
        %381 = vmatprep.mubr.f32.mxu0 0.0
        %382 = vmatmul.mubr.f32.gmra.mrb[0].mxu0 %v254
        %v383 = vpop.f32.mrb[0].mxu0
        %v384 = vadd.f32 0.0, %v383
        %v385 = vpop.f32.mrb[0].mxu0
        %386 = vmatprep.mubr.f32.mxu0 0.0
        %387 = vmatmul.mubr.f32.gmra.mrb[0].mxu0 %v257
        %v388 = vpop.f32.mrb[0].mxu0
        %v389 = vadd.f32 0.0, %v388
        %v390 = vpop.f32.mrb[0].mxu0
        %391 = vmatprep.mubr.f32.mxu0 0.0
        %392 = vmatmul.mubr.f32.gmra.mrb[0].mxu0 %v260
        %v393 = vpop.f32.mrb[0].mxu0
        %v394 = vadd.f32 0.0, %v393
        %v395 = vpop.f32.mrb[0].mxu0
        %396 = vmatprep.mubr.f32.mxu0 0.0
        %397 = vmatmul.mubr.f32.gmra.mrb[0].mxu0 %v263
        %v398 = vpop.f32.mrb[0].mxu0
        %v399 = vadd.f32 0.0, %v398
        %v400 = vpop.f32.mrb[0].mxu0
        %401 = vmatprep.mubr.f32.mxu0 0.0
        %402 = vmatmul.mubr.f32.gmra.mrb[0].mxu0 %v266
        %v403 = vpop.f32.mrb[0].mxu0
        %v404 = vadd.f32 0.0, %v403
        %v405 = vpop.f32.mrb[0].mxu0
        %406 = vmatprep.mubr.f32.mxu0 0.0
        %407 = vmatmul.mubr.f32.gmra.mrb[0].mxu0 %v269
        %v408 = vpop.f32.mrb[0].mxu0
        %v409 = vadd.f32 0.0, %v408
        %v410 = vpop.f32.mrb[0].mxu0
        %411 = vmatprep.mubr.f32.mxu0 0.0
        %412 = vmatmul.mubr.f32.gmra.mrb[0].mxu0 %v272
        %v413 = vpop.f32.mrb[0].mxu0
        %v414 = vadd.f32 0.0, %v413
        %v415 = vpop.f32.mrb[0].mxu0
        %416 = vmatprep.mubr.f32.mxu0 0.0
        %417 = vmatmul.mubr.f32.gmra.mrb[0].mxu0 %v275
        %v418 = vpop.f32.mrb[0].mxu0
        %v419 = vadd.f32 0.0, %v418
        %v420 = vpop.f32.mrb[0].mxu0
        %421 = vdwg.mxu0
        %v422 = vmax.f32 %v344, 0.0
        %v423 = vmax.f32 %v349, 0.0
        %v424 = vmax.f32 %v354, 0.0
        %v425 = vmax.f32 %v359, 0.0
        %v426 = vmax.f32 %v364, 0.0
        %v427 = vmax.f32 %v369, 0.0
        %v428 = vmax.f32 %v374, 0.0
        %v429 = vmax.f32 %v379, 0.0
        %v430 = vmax.f32 %v384, 0.0
        %v431 = vmax.f32 %v389, 0.0
        %v432 = vmax.f32 %v394, 0.0
        %v433 = vmax.f32 %v399, 0.0
        %v434 = vmax.f32 %v404, 0.0
        %v435 = vmax.f32 %v409, 0.0
        %v436 = vmax.f32 %v414, 0.0
        %v437 = vmax.f32 %v419, 0.0
        %v438 = vrsqrt.pop %v422
        %v439 = vmul.f32 %v422, %v438
        %vm440 = vcmp.eq.f32.partialorder %v422, inf
        %v441 = vsel %vm440, %v422, %v439
        %vm442 = vcmp.eq.f32.partialorder %v422, 0.0
        %v443 = vand.u32 %v422, 2147483648
        %v444 = vsel %vm442, %v443, %v441
        %v445 = vrsqrt.pop %v423
        %v446 = vmul.f32 %v423, %v445
        %vm447 = vcmp.eq.f32.partialorder %v423, inf
        %v448 = vsel %vm447, %v423, %v446
        %vm449 = vcmp.eq.f32.partialorder %v423, 0.0
        %v450 = vand.u32 %v423, 2147483648
        %v451 = vsel %vm449, %v450, %v448
        %v452 = vrsqrt.pop %v424
        %v453 = vmul.f32 %v424, %v452
        %vm454 = vcmp.eq.f32.partialorder %v424, inf
        %v455 = vsel %vm454, %v424, %v453
        %vm456 = vcmp.eq.f32.partialorder %v424, 0.0
        %v457 = vand.u32 %v424, 2147483648
        %v458 = vsel %vm456, %v457, %v455
        %v459 = vrsqrt.pop %v425
        %v460 = vmul.f32 %v425, %v459
        %vm461 = vcmp.eq.f32.partialorder %v425, inf
        %v462 = vsel %vm461, %v425, %v460
        %vm463 = vcmp.eq.f32.partialorder %v425, 0.0
        %v464 = vand.u32 %v425, 2147483648
        %v465 = vsel %vm463, %v464, %v462
        %v466 = vrsqrt.pop %v426
        %v467 = vmul.f32 %v426, %v466
        %vm468 = vcmp.eq.f32.partialorder %v426, inf
        %v469 = vsel %vm468, %v426, %v467
        %vm470 = vcmp.eq.f32.partialorder %v426, 0.0
        %v471 = vand.u32 %v426, 2147483648
        %v472 = vsel %vm470, %v471, %v469
        %v473 = vrsqrt.pop %v427
        %v474 = vmul.f32 %v427, %v473
        %vm475 = vcmp.eq.f32.partialorder %v427, inf
        %v476 = vsel %vm475, %v427, %v474
        %vm477 = vcmp.eq.f32.partialorder %v427, 0.0
        %v478 = vand.u32 %v427, 2147483648
        %v479 = vsel %vm477, %v478, %v476
        %v480 = vrsqrt.pop %v428
        %v481 = vmul.f32 %v428, %v480
        %vm482 = vcmp.eq.f32.partialorder %v428, inf
        %v483 = vsel %vm482, %v428, %v481
        %vm484 = vcmp.eq.f32.partialorder %v428, 0.0
        %v485 = vand.u32 %v428, 2147483648
        %v486 = vsel %vm484, %v485, %v483
        %v487 = vrsqrt.pop %v429
        %v488 = vmul.f32 %v429, %v487
        %vm489 = vcmp.eq.f32.partialorder %v429, inf
        %v490 = vsel %vm489, %v429, %v488
        %vm491 = vcmp.eq.f32.partialorder %v429, 0.0
        %v492 = vand.u32 %v429, 2147483648
        %v493 = vsel %vm491, %v492, %v490
        %v494 = vrsqrt.pop %v430
        %v495 = vmul.f32 %v430, %v494
        %vm496 = vcmp.eq.f32.partialorder %v430, inf
        %v497 = vsel %vm496, %v430, %v495
        %vm498 = vcmp.eq.f32.partialorder %v430, 0.0
        %v499 = vand.u32 %v430, 2147483648
        %v500 = vsel %vm498, %v499, %v497
        %v501 = vrsqrt.pop %v431
        %v502 = vmul.f32 %v431, %v501
        %vm503 = vcmp.eq.f32.partialorder %v431, inf
        %v504 = vsel %vm503, %v431, %v502
        %vm505 = vcmp.eq.f32.partialorder %v431, 0.0
        %v506 = vand.u32 %v431, 2147483648
        %v507 = vsel %vm505, %v506, %v504
        %v508 = vrsqrt.pop %v432
        %v509 = vmul.f32 %v432, %v508
        %vm510 = vcmp.eq.f32.partialorder %v432, inf
        %v511 = vsel %vm510, %v432, %v509
        %vm512 = vcmp.eq.f32.partialorder %v432, 0.0
        %v513 = vand.u32 %v432, 2147483648
        %v514 = vsel %vm512, %v513, %v511
        %v515 = vrsqrt.pop %v433
        %v516 = vmul.f32 %v433, %v515
        %vm517 = vcmp.eq.f32.partialorder %v433, inf
        %v518 = vsel %vm517, %v433, %v516
        %vm519 = vcmp.eq.f32.partialorder %v433, 0.0
        %v520 = vand.u32 %v433, 2147483648
        %v521 = vsel %vm519, %v520, %v518
        %v522 = vrsqrt.pop %v434
        %v523 = vmul.f32 %v434, %v522
        %vm524 = vcmp.eq.f32.partialorder %v434, inf
        %v525 = vsel %vm524, %v434, %v523
        %vm526 = vcmp.eq.f32.partialorder %v434, 0.0
        %v527 = vand.u32 %v434, 2147483648
        %v528 = vsel %vm526, %v527, %v525
        %v529 = vrsqrt.pop %v435
        %v530 = vmul.f32 %v435, %v529
        %vm531 = vcmp.eq.f32.partialorder %v435, inf
        %v532 = vsel %vm531, %v435, %v530
        %vm533 = vcmp.eq.f32.partialorder %v435, 0.0
        %v534 = vand.u32 %v435, 2147483648
        %v535 = vsel %vm533, %v534, %v532
        %v536 = vrsqrt.pop %v436
        %v537 = vmul.f32 %v436, %v536
        %vm538 = vcmp.eq.f32.partialorder %v436, inf
        %v539 = vsel %vm538, %v436, %v537
        %vm540 = vcmp.eq.f32.partialorder %v436, 0.0
        %v541 = vand.u32 %v436, 2147483648
        %v542 = vsel %vm540, %v541, %v539
        %v543 = vrsqrt.pop %v437
        %v544 = vmul.f32 %v437, %v543
        %vm545 = vcmp.eq.f32.partialorder %v437, inf
        %v546 = vsel %vm545, %v437, %v544
        %vm547 = vcmp.eq.f32.partialorder %v437, 0.0
        %v548 = vand.u32 %v437, 2147483648
        %v549 = vsel %vm547, %v548, %v546
        %v550 = vld [vmem:[#allocation2] sm:$0xff]
        %v551 = vadd.f32 %v444, %v451
        %v552 = vadd.f32 %v551, %v458
        %v553 = vadd.f32 %v552, %v465
        %v554 = vadd.f32 %v553, %v472
        %v555 = vadd.f32 %v554, %v479
        %v556 = vadd.f32 %v555, %v486
        %v557 = vadd.f32 %v556, %v493
        %v558 = vadd.f32 %v557, %v500
        %v559 = vadd.f32 %v558, %v507
        %v560 = vadd.f32 %v559, %v514
        %v561 = vadd.f32 %v560, %v521
        %v562 = vadd.f32 %v561, %v528
        %v563 = vadd.f32 %v562, %v535
        %v564 = vadd.f32 %v563, %v542
        %v565 = vadd.f32 %v564, %v549
        %v566 = vadd.f32 %v550, %v565
        %567 = vst [vmem:[#allocation2] sm:$0xff] %v566
        // Predicated region
        $region33: #{tpu_custom_call.1} parent=27 // pred_check
          %p568 = pneg %p206
        $region34: #{tpu_custom_call.1} parent=27 // pred_check_branch
          %570 = sbr.rel (%p568) target = $region36
        $region35: #{tpu_custom_call.1} parent=27 // pred_region
          %v571 = vld [vmem:[#allocation2] sm:$0xff]
          %v572 = vrot.slane %v571, 4
          %v573 = vadd.f32 %v571, %v572
          %v574 = vrot.slane %v573, 2
          %v575 = vadd.f32 %v573, %v574
          %v576 = vrot.slane %v575, 1
          %v577 = vadd.f32 %v575, %v576
          %v578 = vmul.f32 %v577, 0.0625
          %579 = vst [vmem:[%s188] sm:$0x1] %v578
        $region36: #{tpu_custom_call.1} parent=27 // pred_fallthru
          _
        %s580 = sand.u32 %s101, 1
        %s581 = scalar_lea.sflag [#allocation4], %s580
        %s582 = sand.u32 %s101, 1
        %s583 = scalar_lea.vmem [#allocation3], %s582
        // Predicated region
        $region37: #{tpu_custom_call.1} parent=27 // pred_check
          %p584 = pneg %p111
        $region38: #{tpu_custom_call.1} parent=27 // pred_check_branch
          %586 = sbr.rel (%p584) target = $region40
        $region39: #{tpu_custom_call.1} parent=27 // pred_region
          %s588 = ssub.s32 16, 16
          %589 = vsyncadd %s581, %s588
          %s590 = sadd.s32 %s22, %s21
          %s591 = smul.addr %s590, 16
          %s592 = scalar_lea.hbm %s2, %s591
          %s594 = sshll.u32 %s583, 4
          %s595 = int_to_ptr.vmem [resolvable:$true] %s594
          %597 = dma.vmem_to_hbm [thread:$0]  %s595, 16, %s592, %s581
        $region40: #{tpu_custom_call.1} parent=27 // pred_fallthru
          _
      $region28: #{tpu_custom_call.1} parent=5 // pred_fallthru
        _
      %p598 = scmp.le.s32.totalorder 2, %s11
      // Predicated region
      $region41: #{tpu_custom_call.1} parent=5 // pred_check
        %p599 = pneg %p598
      $region42: #{tpu_custom_call.1} parent=5 // pred_check_branch
        %601 = sbr.rel (%p599) target = $region44
      $region43: #{tpu_custom_call.1} parent=5 // pred_region
        %s602 = ssub.s32 %s11, 2
        // Predicated region
        $region45: #{tpu_custom_call.1} parent=43 // pred_check
          %p603 = pneg %p117
        $region46: #{tpu_custom_call.1} parent=43 // pred_check_branch
          %605 = sbr.rel (%p603) target = $region48
        $region47: #{tpu_custom_call.1} parent=43 // pred_region
          %s606 = sand.u32 %s102, 1
          %s607 = scalar_lea.sflag [#allocation4], %s606
          %s608 = sand.u32 %s102, 1
          %s609 = scalar_lea.vmem [#allocation3], %s608
          %610 = dma.done %s607, 16
        $region48: #{tpu_custom_call.1} parent=43 // pred_fallthru
          _
      $region44: #{tpu_custom_call.1} parent=5 // pred_fallthru
        _
    $region6: #{tpu_custom_call.1} parent=1 // loop_footer
      %s15 = sadd.s32 1, %s11
    $region7: #{tpu_custom_call.1} parent=1 // loop_footer_branch
      %10 = sbr.rel target = $region3
    $region8: #{tpu_custom_call.1} parent=1 // loop_exit
      _
    %611 = vsyncpa [#allocation4], 1
    %s612 = scalar_lea.sflag [#allocation4], 1
    %613 = vsyncpa %s612, 1

</llo_original>
